<compile_context>
chip_gen: v6e
topology: v6e:2x2x1
jax: 0.10.0
libtpu: 0.0.40
codegen_flags: <defaults>
</compile_context>

<pallas_src>
import numpy as np
import jax
import jax.numpy as jnp
from jax.experimental import pallas as pl
from jax.experimental.pallas import tpu as pltpu


def dft_fused_kernel(x_ref, w_ref, real_ref, imag_ref):
    """One MXU stream: (tm, N) @ (N, 2N) -> split into real / imag halves."""
    n = real_ref.shape[-1]
    res = jnp.dot(x_ref[...], w_ref[...], preferred_element_type=jnp.float32)
    real_ref[...] = res[:, :n].astype(real_ref.dtype)
    imag_ref[...] = res[:, n:].astype(imag_ref.dtype)


def make_dft_weights(n: int):
    """Deterministic DFT-basis init (same as the nn.Parameter init)."""
    k = np.arange(n, dtype=np.float64).reshape(-1, 1)
    m = np.arange(n, dtype=np.float64).reshape(1, -1)
    angle = 2.0 * np.pi * k * m / n
    w_real = np.cos(angle).astype(np.float32)
    w_imag = (-np.sin(angle)).astype(np.float32)
    return jnp.asarray(w_real), jnp.asarray(w_imag)


def dft_net_forward(x, w_real, w_imag, *, tm: int | None = None,
                    use_bf16: bool = False):
    """x: (B, N) float32 -> (real_part, imag_part), each (B, N) float32.

    use_bf16=True casts operands to bfloat16 (v6e/v7x fast MXU path); the
    accumulation and outputs stay float32.  Note bf16 loosens per-element
    accuracy to ~1e-2 relative for K=256 dots.
    """
    B, N = x.shape

    # Fuse the two DFT matmuls into a single (N, 2N) weight.
    w_fused = jnp.concatenate([w_real, w_imag], axis=1)

    if use_bf16:
        x = x.astype(jnp.bfloat16)
        w_fused = w_fused.astype(jnp.bfloat16)

    # Full-batch tile for small B (single grid step); 256-row tiles otherwise.
    if tm is None:
        tm = B if B <= 256 else 256
    assert B % tm == 0, "batch must be a multiple of the batch tile"
    grid = (B // tm,)

    # Constant-index weight block.  With more than one grid step, single-buffer
    # it (it is never re-fetched), halving resident weight VMEM — this is what
    # keeps large N within v7x's 64 MiB VMEM.
    if grid[0] > 1:
        weight_spec = pl.BlockSpec((N, 2 * N), lambda i: (0, 0),
                                   pipeline_mode=pl.Buffered(1))
    else:
        weight_spec = pl.BlockSpec((N, 2 * N), lambda i: (0, 0))
    # TODO(synk): for N beyond ~2048 add a K-tiled accumulator path (reduction
    # grid axis + f32 VMEM scratch) instead of keeping (N, 2N) fully resident.

    itemsize = jnp.dtype(x.dtype).itemsize
    cost = pl.CostEstimate(
        flops=4 * B * N * N,                       # (B, N) @ (N, 2N)
        transcendentals=0,
        bytes_accessed=B * N * itemsize            # x
                       + N * 2 * N * itemsize      # fused weight
                       + 2 * B * N * 4,            # two f32 outputs
    )

    return pl.pallas_call(
        dft_fused_kernel,
        out_shape=(
            jax.ShapeDtypeStruct((B, N), jnp.float32),
            jax.ShapeDtypeStruct((B, N), jnp.float32),
        ),
        grid_spec=pl.GridSpec(
            grid=grid,
            in_specs=[
                pl.BlockSpec((tm, N), lambda i: (i, 0)),   # x tile
                weight_spec,                               # fused W (resident)
            ],
            out_specs=(
                pl.BlockSpec((tm, N), lambda i: (i, 0)),   # real
                pl.BlockSpec((tm, N), lambda i: (i, 0)),   # imag
            ),
        ),
        compiler_params=pltpu.CompilerParams(
            dimension_semantics=("parallel",),
        ),
        cost_estimate=cost,
    )(x, w_fused)


if __name__ == "__main__":
    input_size = 256   # matches the module's input_size
    batch = 16

    key = jax.random.PRNGKey(0)
    x = jax.random.normal(key, (batch, input_size), dtype=jnp.float32)

    w_real, w_imag = make_dft_weights(input_size)

    # f32 path in the demo so the tight tolerance check (original module
    # semantics) holds; flip use_bf16=True on v6e/v7x for the fast MXU path.
    real_part, imag_part = dft_net_forward(x, w_real, w_imag, use_bf16=False)
    jax.block_until_ready((real_part, imag_part))

    # Correctness check vs. plain JAX reference (same math as torch.matmul).
    ref_real = x @ w_real
    ref_imag = x @ w_imag
    np.testing.assert_allclose(np.asarray(real_part), np.asarray(ref_real),
                               rtol=1e-4, atol=1e-4)
    np.testing.assert_allclose(np.asarray(imag_part), np.asarray(ref_imag),
                               rtol=1e-4, atol=1e-4)

    print("KERNEL_OK")
</pallas_src>

<mosaic_0001>
module attributes {stable_mosaic.version = 11 : i64} {
  func.func @dft_fused_kernel(%arg0: i32, %arg1: memref<16x256xf32, #tpu.memory_space<vmem>>, %arg2: memref<256x512xf32, #tpu.memory_space<vmem>>, %arg3: memref<16x256xf32, #tpu.memory_space<vmem>>, %arg4: memref<16x256xf32, #tpu.memory_space<vmem>>) attributes {dimension_semantics = [#tpu.dimension_semantics<parallel>], iteration_bounds = array<i64: 1>, scalar_prefetch = 0 : i64, scratch_operands = 0 : i64, tpu.core_type = #tpu.core_type<tc>, window_params = [{transform_indices = @transform_0, window_bounds = array<i64: 16, 256>}, {pipeline_mode = #tpu.pipeline_mode<synchronous>, transform_indices = @transform_1, window_bounds = array<i64: 256, 512>}, {transform_indices = @transform_2, window_bounds = array<i64: 16, 256>}, {transform_indices = @transform_3, window_bounds = array<i64: 16, 256>}]} {
    %c0 = arith.constant 0 : index
    %c0_0 = arith.constant 0 : index
    %0 = vector.load %arg1[%c0, %c0_0] : memref<16x256xf32, #tpu.memory_space<vmem>>, vector<16x256xf32>
    %c0_1 = arith.constant 0 : index
    %c0_2 = arith.constant 0 : index
    %1 = vector.load %arg2[%c0_1, %c0_2] : memref<256x512xf32, #tpu.memory_space<vmem>>, vector<256x512xf32>
    %cst = arith.constant dense<0.000000e+00> : vector<16x512xf32>
    %2 = tpu.matmul %0, %1, %cst {dimension_numbers = #tpu.dot_dimension_numbers<[1], [0], [0], [1], [0, 0, 1, 1], [], []>} : vector<16x256xf32>, vector<256x512xf32>, vector<16x512xf32> -> vector<16x512xf32>
    %3 = vector.extract_strided_slice %2 {offsets = [0, 0], sizes = [16, 256], strides = [1, 1]} : vector<16x512xf32> to vector<16x256xf32>
    %c0_3 = arith.constant 0 : index
    %c0_4 = arith.constant 0 : index
    %4 = vector.load %arg3[%c0_3, %c0_4] : memref<16x256xf32, #tpu.memory_space<vmem>>, vector<16x256xf32>
    tpu.vector_store %arg3[%c0_3, %c0_4], %3 {strides = array<i32>} : memref<16x256xf32, #tpu.memory_space<vmem>>, vector<16x256xf32>,
    %5 = vector.extract_strided_slice %2 {offsets = [0, 256], sizes = [16, 256], strides = [1, 1]} : vector<16x512xf32> to vector<16x256xf32>
    %c0_5 = arith.constant 0 : index
    %c0_6 = arith.constant 0 : index
    %6 = vector.load %arg4[%c0_5, %c0_6] : memref<16x256xf32, #tpu.memory_space<vmem>>, vector<16x256xf32>
    tpu.vector_store %arg4[%c0_5, %c0_6], %5 {strides = array<i32>} : memref<16x256xf32, #tpu.memory_space<vmem>>, vector<16x256xf32>,
    return
  }
  func.func @transform_0(%arg0: i32) -> (i32, i32) {
    %c0_i32 = arith.constant 0 : i32
    %c0_i32_0 = arith.constant 0 : i32
    return %arg0, %c0_i32 : i32, i32
  }
  func.func @transform_1(%arg0: i32) -> (i32, i32) {
    %c0_i32 = arith.constant 0 : i32
    %c0_i32_0 = arith.constant 0 : i32
    %c0_i32_1 = arith.constant 0 : i32
    return %c0_i32, %c0_i32_0 : i32, i32
  }
  func.func @transform_2(%arg0: i32) -> (i32, i32) {
    %c0_i32 = arith.constant 0 : i32
    %c0_i32_0 = arith.constant 0 : i32
    return %arg0, %c0_i32 : i32, i32
  }
  func.func @transform_3(%arg0: i32) -> (i32, i32) {
    %c0_i32 = arith.constant 0 : i32
    %c0_i32_0 = arith.constant 0 : i32
    return %arg0, %c0_i32 : i32, i32
  }
}

</mosaic_0001>

<llo_original>
// kernel: tpu_custom_call.1
$region0: #{tpu_custom_call.1}
  #allocation0 [shape = 'u32[]', space=smem, size = 0x4, offset = 0x4, fixed_abs, tag = 'smem constant byte address 0x4 - core index']
  #allocation1 [shape = 'u32[144,128]{1,0:T(1,128)}', space=vmem, size = 0x12000, scoped, tag = 'internal scratch']
  %s0 = inlined_call_operand.hbm [shape: f32[16,256], index: 0, kind: input, shape index: {}]
  %s1 = inlined_call_operand.hbm [shape: f32[256,512], index: 1, kind: input, shape index: {}]
  %s2 = inlined_call_operand.hbm [shape: f32[16,256], index: 2, kind: output, shape index: {0}]
  %s3 = inlined_call_operand.hbm [shape: f32[16,256], index: 3, kind: output, shape index: {1}]
  %4 = xla_tuple %s2, %s3
  %s5 = sld [smem:[#allocation0]]
  $region34: #{tpu_custom_call.1} parent=0
    _
  %s7 = ssub.s32 1, %s5
  %s8 = scalar_select 0, %s7, %s5
  $region1: #{tpu_custom_call.1} parent=0
    #allocation2 [shape = 'u8[16384]{0}', space=vmem, size = 0x4000, scoped, tag = 'input window, operand 0, single buffered']
    #allocation3 [shape = 's32[1]{0}', space=sflag, size = 0x4, scoped, tag = 'scoped memory for tpu_custom_call.1']
    #allocation4 [shape = 's32[1]{0}', space=sflag, size = 0x4, scoped, tag = 'scoped memory for tpu_custom_call.1']
    #allocation5 [shape = 'u8[524288]{0}', space=vmem, size = 0x80000, scoped, tag = 'input window, operand 1, single buffered']
    #allocation6 [shape = 's32[1]{0}', space=sflag, size = 0x4, scoped, tag = 'scoped memory for tpu_custom_call.1']
    #allocation7 [shape = 'u8[16384]{0}', space=vmem, size = 0x4000, scoped, tag = 'output window, operand 0, single buffered']
    #allocation8 [shape = 'u8[16384]{0}', space=vmem, size = 0x4000, scoped, tag = 'output window, operand 1, single buffered']
    #allocation9 [shape = 's32[1]{0}', space=sflag, size = 0x4, scoped, tag = 'scoped memory for tpu_custom_call.1']
    %9 = vsyncpa [#allocation3], 0
    %10 = vsyncpa [#allocation6], 0
    %11 = vsyncpa [#allocation4], 0
    %12 = vsyncpa [#allocation9], 0
    // Predicated region
    $region2: #{tpu_custom_call.1} parent=1 // pred_check
      _
    $region3: #{tpu_custom_call.1} parent=1 // pred_check_branch
      %14 = sbr.rel (0) target = $region5
    $region4: #{tpu_custom_call.1} parent=1 // pred_region
      %s16 = ssub.s32 512, 512
      %17 = vsyncadd [#allocation3], %s16
      %s18 = sshll.u32 [#allocation2], 4
      %s19 = int_to_ptr.vmem [resolvable:$true] %s18
      %24 = dma.hbm_to_vmem [thread:$0]  %s0, 512, %s19, [#allocation3], 256, 256, 16
    $region5: #{tpu_custom_call.1} parent=1 // pred_fallthru
      _
    // Predicated region
    $region6: #{tpu_custom_call.1} parent=1 // pred_check
      _
    $region7: #{tpu_custom_call.1} parent=1 // pred_check_branch
      %26 = sbr.rel (0) target = $region9
    $region8: #{tpu_custom_call.1} parent=1 // pred_region
      %s28 = ssub.s32 16384, 16384
      %29 = vsyncadd [#allocation6], %s28
      %s30 = sshll.u32 [#allocation5], 4
      %s31 = int_to_ptr.vmem [resolvable:$true] %s30
      %36 = dma.hbm_to_vmem [thread:$0]  %s1, 16384, %s31, [#allocation6], 512, 512, 32
    $region9: #{tpu_custom_call.1} parent=1 // pred_fallthru
      _
    // Predicated region
    $region10: #{tpu_custom_call.1} parent=1 // pred_check
      _
    $region11: #{tpu_custom_call.1} parent=1 // pred_check_branch
      %38 = sbr.rel (0) target = $region13
    $region12: #{tpu_custom_call.1} parent=1 // pred_region
      %39 = dma.done [#allocation3], 512
    $region13: #{tpu_custom_call.1} parent=1 // pred_fallthru
      _
    // Predicated region
    $region14: #{tpu_custom_call.1} parent=1 // pred_check
      _
    $region15: #{tpu_custom_call.1} parent=1 // pred_check_branch
      %41 = sbr.rel (0) target = $region17
    $region16: #{tpu_custom_call.1} parent=1 // pred_region
      %42 = dma.done [#allocation6], 16384
    $region17: #{tpu_custom_call.1} parent=1 // pred_fallthru
      _
    %v43 = vld [vmem:[#allocation2] sm:$0xff]
    %v44 = vld [vmem:[#allocation2 + $0x8] sm:$0xff]
    %v45 = vld [vmem:[#allocation2 + $0x10] sm:$0xff]
    %v46 = vld [vmem:[#allocation2 + $0x18] sm:$0xff]
    %v47 = vld [vmem:[#allocation5] sm:$0xff]
    %v48 = vld [vmem:[#allocation5 + $0x8] sm:$0xff]
    %v49 = vld [vmem:[#allocation5 + $0x10] sm:$0xff]
    %v50 = vld [vmem:[#allocation5 + $0x18] sm:$0xff]
    %v51 = vld [vmem:[#allocation5 + $0x20] sm:$0xff]
    %v52 = vld [vmem:[#allocation5 + $0x28] sm:$0xff]
    %v53 = vld [vmem:[#allocation5 + $0x30] sm:$0xff]
    %v54 = vld [vmem:[#allocation5 + $0x38] sm:$0xff]
    %v55 = vld [vmem:[#allocation5 + $0x40] sm:$0xff]
    %v56 = vld [vmem:[#allocation5 + $0x48] sm:$0xff]
    %v57 = vld [vmem:[#allocation5 + $0x50] sm:$0xff]
    %v58 = vld [vmem:[#allocation5 + $0x58] sm:$0xff]
    %v59 = vld [vmem:[#allocation5 + $0x60] sm:$0xff]
    %v60 = vld [vmem:[#allocation5 + $0x68] sm:$0xff]
    %v61 = vld [vmem:[#allocation5 + $0x70] sm:$0xff]
    %v62 = vld [vmem:[#allocation5 + $0x78] sm:$0xff]
    %v63 = vld [vmem:[#allocation5 + $0x80] sm:$0xff]
    %v64 = vld [vmem:[#allocation5 + $0x88] sm:$0xff]
    %v65 = vld [vmem:[#allocation5 + $0x90] sm:$0xff]
    %v66 = vld [vmem:[#allocation5 + $0x98] sm:$0xff]
    %v67 = vld [vmem:[#allocation5 + $0xa0] sm:$0xff]
    %v68 = vld [vmem:[#allocation5 + $0xa8] sm:$0xff]
    %v69 = vld [vmem:[#allocation5 + $0xb0] sm:$0xff]
    %v70 = vld [vmem:[#allocation5 + $0xb8] sm:$0xff]
    %v71 = vld [vmem:[#allocation5 + $0xc0] sm:$0xff]
    %v72 = vld [vmem:[#allocation5 + $0xc8] sm:$0xff]
    %v73 = vld [vmem:[#allocation5 + $0xd0] sm:$0xff]
    %v74 = vld [vmem:[#allocation5 + $0xd8] sm:$0xff]
    %v75 = vld [vmem:[#allocation5 + $0xe0] sm:$0xff]
    %v76 = vld [vmem:[#allocation5 + $0xe8] sm:$0xff]
    %v77 = vld [vmem:[#allocation5 + $0xf0] sm:$0xff]
    %v78 = vld [vmem:[#allocation5 + $0xf8] sm:$0xff]
    %v79 = vld [vmem:[#allocation5 + $0x100] sm:$0xff]
    %v80 = vld [vmem:[#allocation5 + $0x108] sm:$0xff]
    %v81 = vld [vmem:[#allocation5 + $0x110] sm:$0xff]
    %v82 = vld [vmem:[#allocation5 + $0x118] sm:$0xff]
    %v83 = vld [vmem:[#allocation5 + $0x120] sm:$0xff]
    %v84 = vld [vmem:[#allocation5 + $0x128] sm:$0xff]
    %v85 = vld [vmem:[#allocation5 + $0x130] sm:$0xff]
    %v86 = vld [vmem:[#allocation5 + $0x138] sm:$0xff]
    %v87 = vld [vmem:[#allocation5 + $0x140] sm:$0xff]
    %v88 = vld [vmem:[#allocation5 + $0x148] sm:$0xff]
    %v89 = vld [vmem:[#allocation5 + $0x150] sm:$0xff]
    %v90 = vld [vmem:[#allocation5 + $0x158] sm:$0xff]
    %v91 = vld [vmem:[#allocation5 + $0x160] sm:$0xff]
    %v92 = vld [vmem:[#allocation5 + $0x168] sm:$0xff]
    %v93 = vld [vmem:[#allocation5 + $0x170] sm:$0xff]
    %v94 = vld [vmem:[#allocation5 + $0x178] sm:$0xff]
    %v95 = vld [vmem:[#allocation5 + $0x180] sm:$0xff]
    %v96 = vld [vmem:[#allocation5 + $0x188] sm:$0xff]
    %v97 = vld [vmem:[#allocation5 + $0x190] sm:$0xff]
    %v98 = vld [vmem:[#allocation5 + $0x198] sm:$0xff]
    %v99 = vld [vmem:[#allocation5 + $0x1a0] sm:$0xff]
    %v100 = vld [vmem:[#allocation5 + $0x1a8] sm:$0xff]
    %v101 = vld [vmem:[#allocation5 + $0x1b0] sm:$0xff]
    %v102 = vld [vmem:[#allocation5 + $0x1b8] sm:$0xff]
    %v103 = vld [vmem:[#allocation5 + $0x1c0] sm:$0xff]
    %v104 = vld [vmem:[#allocation5 + $0x1c8] sm:$0xff]
    %v105 = vld [vmem:[#allocation5 + $0x1d0] sm:$0xff]
    %v106 = vld [vmem:[#allocation5 + $0x1d8] sm:$0xff]
    %v107 = vld [vmem:[#allocation5 + $0x1e0] sm:$0xff]
    %v108 = vld [vmem:[#allocation5 + $0x1e8] sm:$0xff]
    %v109 = vld [vmem:[#allocation5 + $0x1f0] sm:$0xff]
    %v110 = vld [vmem:[#allocation5 + $0x1f8] sm:$0xff]
    %v111 = vld [vmem:[#allocation5 + $0x200] sm:$0xff]
    %v112 = vld [vmem:[#allocation5 + $0x208] sm:$0xff]
    %v113 = vld [vmem:[#allocation5 + $0x210] sm:$0xff]
    %v114 = vld [vmem:[#allocation5 + $0x218] sm:$0xff]
    %v115 = vld [vmem:[#allocation5 + $0x220] sm:$0xff]
    %v116 = vld [vmem:[#allocation5 + $0x228] sm:$0xff]
    %v117 = vld [vmem:[#allocation5 + $0x230] sm:$0xff]
    %v118 = vld [vmem:[#allocation5 + $0x238] sm:$0xff]
    %v119 = vld [vmem:[#allocation5 + $0x240] sm:$0xff]
    %v120 = vld [vmem:[#allocation5 + $0x248] sm:$0xff]
    %v121 = vld [vmem:[#allocation5 + $0x250] sm:$0xff]
    %v122 = vld [vmem:[#allocation5 + $0x258] sm:$0xff]
    %v123 = vld [vmem:[#allocation5 + $0x260] sm:$0xff]
    %v124 = vld [vmem:[#allocation5 + $0x268] sm:$0xff]
    %v125 = vld [vmem:[#allocation5 + $0x270] sm:$0xff]
    %v126 = vld [vmem:[#allocation5 + $0x278] sm:$0xff]
    %v127 = vld [vmem:[#allocation5 + $0x280] sm:$0xff]
    %v128 = vld [vmem:[#allocation5 + $0x288] sm:$0xff]
    %v129 = vld [vmem:[#allocation5 + $0x290] sm:$0xff]
    %v130 = vld [vmem:[#allocation5 + $0x298] sm:$0xff]
    %v131 = vld [vmem:[#allocation5 + $0x2a0] sm:$0xff]
    %v132 = vld [vmem:[#allocation5 + $0x2a8] sm:$0xff]
    %v133 = vld [vmem:[#allocation5 + $0x2b0] sm:$0xff]
    %v134 = vld [vmem:[#allocation5 + $0x2b8] sm:$0xff]
    %v135 = vld [vmem:[#allocation5 + $0x2c0] sm:$0xff]
    %v136 = vld [vmem:[#allocation5 + $0x2c8] sm:$0xff]
    %v137 = vld [vmem:[#allocation5 + $0x2d0] sm:$0xff]
    %v138 = vld [vmem:[#allocation5 + $0x2d8] sm:$0xff]
    %v139 = vld [vmem:[#allocation5 + $0x2e0] sm:$0xff]
    %v140 = vld [vmem:[#allocation5 + $0x2e8] sm:$0xff]
    %v141 = vld [vmem:[#allocation5 + $0x2f0] sm:$0xff]
    %v142 = vld [vmem:[#allocation5 + $0x2f8] sm:$0xff]
    %v143 = vld [vmem:[#allocation5 + $0x300] sm:$0xff]
    %v144 = vld [vmem:[#allocation5 + $0x308] sm:$0xff]
    %v145 = vld [vmem:[#allocation5 + $0x310] sm:$0xff]
    %v146 = vld [vmem:[#allocation5 + $0x318] sm:$0xff]
    %v147 = vld [vmem:[#allocation5 + $0x320] sm:$0xff]
    %v148 = vld [vmem:[#allocation5 + $0x328] sm:$0xff]
    %v149 = vld [vmem:[#allocation5 + $0x330] sm:$0xff]
    %v150 = vld [vmem:[#allocation5 + $0x338] sm:$0xff]
    %v151 = vld [vmem:[#allocation5 + $0x340] sm:$0xff]
    %v152 = vld [vmem:[#allocation5 + $0x348] sm:$0xff]
    %v153 = vld [vmem:[#allocation5 + $0x350] sm:$0xff]
    %v154 = vld [vmem:[#allocation5 + $0x358] sm:$0xff]
    %v155 = vld [vmem:[#allocation5 + $0x360] sm:$0xff]
    %v156 = vld [vmem:[#allocation5 + $0x368] sm:$0xff]
    %v157 = vld [vmem:[#allocation5 + $0x370] sm:$0xff]
    %v158 = vld [vmem:[#allocation5 + $0x378] sm:$0xff]
    %v159 = vld [vmem:[#allocation5 + $0x380] sm:$0xff]
    %v160 = vld [vmem:[#allocation5 + $0x388] sm:$0xff]
    %v161 = vld [vmem:[#allocation5 + $0x390] sm:$0xff]
    %v162 = vld [vmem:[#allocation5 + $0x398] sm:$0xff]
    %v163 = vld [vmem:[#allocation5 + $0x3a0] sm:$0xff]
    %v164 = vld [vmem:[#allocation5 + $0x3a8] sm:$0xff]
    %v165 = vld [vmem:[#allocation5 + $0x3b0] sm:$0xff]
    %v166 = vld [vmem:[#allocation5 + $0x3b8] sm:$0xff]
    %v167 = vld [vmem:[#allocation5 + $0x3c0] sm:$0xff]
    %v168 = vld [vmem:[#allocation5 + $0x3c8] sm:$0xff]
    %v169 = vld [vmem:[#allocation5 + $0x3d0] sm:$0xff]
    %v170 = vld [vmem:[#allocation5 + $0x3d8] sm:$0xff]
    %v171 = vld [vmem:[#allocation5 + $0x3e0] sm:$0xff]
    %v172 = vld [vmem:[#allocation5 + $0x3e8] sm:$0xff]
    %v173 = vld [vmem:[#allocation5 + $0x3f0] sm:$0xff]
    %v174 = vld [vmem:[#allocation5 + $0x3f8] sm:$0xff]
    %175 = vmatprep.subr.mxu0 %v108
    %176 = vmatpush1.msra.mxu0 %v107
    %177 = vmatprep.subr.mxu0 %v104
    %178 = vmatpush1.msra.mxu0 %v103
    %179 = vmatprep.subr.mxu0 %v100
    %180 = vmatpush1.msra.mxu0 %v99
    %181 = vmatprep.subr.mxu0 %v96
    %182 = vmatpush1.msra.mxu0 %v95
    %183 = vmatprep.subr.mxu0 %v92
    %184 = vmatpush1.msra.mxu0 %v91
    %185 = vmatprep.subr.mxu0 %v88
    %186 = vmatpush1.msra.mxu0 %v87
    %187 = vmatprep.subr.mxu0 %v84
    %188 = vmatpush1.msra.mxu0 %v83
    %189 = vmatprep.subr.mxu0 %v80
    %190 = vmatpush1.msra.mxu0 %v79
    %191 = vmatprep.subr.mxu0 %v76
    %192 = vmatpush1.msra.mxu0 %v75
    %193 = vmatprep.subr.mxu0 %v72
    %194 = vmatpush1.msra.mxu0 %v71
    %195 = vmatprep.subr.mxu0 %v68
    %196 = vmatpush1.msra.mxu0 %v67
    %197 = vmatprep.subr.mxu0 %v64
    %198 = vmatpush1.msra.mxu0 %v63
    %199 = vmatprep.subr.mxu0 %v60
    %200 = vmatpush1.msra.mxu0 %v59
    %201 = vmatprep.subr.mxu0 %v56
    %202 = vmatpush1.msra.mxu0 %v55
    %203 = vmatprep.subr.mxu0 %v52
    %204 = vmatpush1.msra.mxu0 %v51
    %205 = vmatprep.subr.mxu0 %v48
    %206 = vmatpush1.msra.mxu0 %v47
    %207 = vmatprep.subr.mxu0 %v172
    %208 = vmatpush2.msra.mxu0 %v171
    %209 = vmatprep.subr.mxu0 %v168
    %210 = vmatpush2.msra.mxu0 %v167
    %211 = vmatprep.subr.mxu0 %v164
    %212 = vmatpush2.msra.mxu0 %v163
    %213 = vmatprep.subr.mxu0 %v160
    %214 = vmatpush2.msra.mxu0 %v159
    %215 = vmatprep.subr.mxu0 %v156
    %216 = vmatpush2.msra.mxu0 %v155
    %217 = vmatprep.subr.mxu0 %v152
    %218 = vmatpush2.msra.mxu0 %v151
    %219 = vmatprep.subr.mxu0 %v148
    %220 = vmatpush2.msra.mxu0 %v147
    %221 = vmatprep.subr.mxu0 %v144
    %222 = vmatpush2.msra.mxu0 %v143
    %223 = vmatprep.subr.mxu0 %v140
    %224 = vmatpush2.msra.mxu0 %v139
    %225 = vmatprep.subr.mxu0 %v136
    %226 = vmatpush2.msra.mxu0 %v135
    %227 = vmatprep.subr.mxu0 %v132
    %228 = vmatpush2.msra.mxu0 %v131
    %229 = vmatprep.subr.mxu0 %v128
    %230 = vmatpush2.msra.mxu0 %v127
    %231 = vmatprep.subr.mxu0 %v124
    %232 = vmatpush2.msra.mxu0 %v123
    %233 = vmatprep.subr.mxu0 %v120
    %234 = vmatpush2.msra.mxu0 %v119
    %235 = vmatprep.subr.mxu0 %v116
    %236 = vmatpush2.msra.mxu0 %v115
    %237 = vmatprep.subr.mxu0 %v112
    %238 = vmatpush2.msra.mxu0 %v111
    %239 = vmatprep.mubr.f32.mxu0 %v44
    %240 = vmatmul.mubr.f32.gmra.mxu0 %v43
    %v241 = vpop.f32.mrf.mxu0
    %v242 = vadd.f32 0.0, %v241
    %v243 = vpop.f32.mrf.mxu0
    %v244 = vadd.f32 0.0, %v243
    %245 = vmatprep.mubr.f32.mxu0 %v46
    %246 = vmatmul.mubr.f32.gmra.mxu0 %v45
    %v247 = vpop.f32.mrf.mxu0
    %v248 = vadd.f32 0.0, %v247
    %v249 = vpop.f32.mrf.mxu0
    %v250 = vadd.f32 0.0, %v249
    %251 = vdwg.mxu0
    %252 = vmatprep.subr.mxu0 %v110
    %253 = vmatpush1.msra.mxu0 %v109
    %254 = vmatprep.subr.mxu0 %v106
    %255 = vmatpush1.msra.mxu0 %v105
    %256 = vmatprep.subr.mxu0 %v102
    %257 = vmatpush1.msra.mxu0 %v101
    %258 = vmatprep.subr.mxu0 %v98
    %259 = vmatpush1.msra.mxu0 %v97
    %260 = vmatprep.subr.mxu0 %v94
    %261 = vmatpush1.msra.mxu0 %v93
    %262 = vmatprep.subr.mxu0 %v90
    %263 = vmatpush1.msra.mxu0 %v89
    %264 = vmatprep.subr.mxu0 %v86
    %265 = vmatpush1.msra.mxu0 %v85
    %266 = vmatprep.subr.mxu0 %v82
    %267 = vmatpush1.msra.mxu0 %v81
    %268 = vmatprep.subr.mxu0 %v78
    %269 = vmatpush1.msra.mxu0 %v77
    %270 = vmatprep.subr.mxu0 %v74
    %271 = vmatpush1.msra.mxu0 %v73
    %272 = vmatprep.subr.mxu0 %v70
    %273 = vmatpush1.msra.mxu0 %v69
    %274 = vmatprep.subr.mxu0 %v66
    %275 = vmatpush1.msra.mxu0 %v65
    %276 = vmatprep.subr.mxu0 %v62
    %277 = vmatpush1.msra.mxu0 %v61
    %278 = vmatprep.subr.mxu0 %v58
    %279 = vmatpush1.msra.mxu0 %v57
    %280 = vmatprep.subr.mxu0 %v54
    %281 = vmatpush1.msra.mxu0 %v53
    %282 = vmatprep.subr.mxu0 %v50
    %283 = vmatpush1.msra.mxu0 %v49
    %284 = vmatprep.subr.mxu0 %v174
    %285 = vmatpush2.msra.mxu0 %v173
    %286 = vmatprep.subr.mxu0 %v170
    %287 = vmatpush2.msra.mxu0 %v169
    %288 = vmatprep.subr.mxu0 %v166
    %289 = vmatpush2.msra.mxu0 %v165
    %290 = vmatprep.subr.mxu0 %v162
    %291 = vmatpush2.msra.mxu0 %v161
    %292 = vmatprep.subr.mxu0 %v158
    %293 = vmatpush2.msra.mxu0 %v157
    %294 = vmatprep.subr.mxu0 %v154
    %295 = vmatpush2.msra.mxu0 %v153
    %296 = vmatprep.subr.mxu0 %v150
    %297 = vmatpush2.msra.mxu0 %v149
    %298 = vmatprep.subr.mxu0 %v146
    %299 = vmatpush2.msra.mxu0 %v145
    %300 = vmatprep.subr.mxu0 %v142
    %301 = vmatpush2.msra.mxu0 %v141
    %302 = vmatprep.subr.mxu0 %v138
    %303 = vmatpush2.msra.mxu0 %v137
    %304 = vmatprep.subr.mxu0 %v134
    %305 = vmatpush2.msra.mxu0 %v133
    %306 = vmatprep.subr.mxu0 %v130
    %307 = vmatpush2.msra.mxu0 %v129
    %308 = vmatprep.subr.mxu0 %v126
    %309 = vmatpush2.msra.mxu0 %v125
    %310 = vmatprep.subr.mxu0 %v122
    %311 = vmatpush2.msra.mxu0 %v121
    %312 = vmatprep.subr.mxu0 %v118
    %313 = vmatpush2.msra.mxu0 %v117
    %314 = vmatprep.subr.mxu0 %v114
    %315 = vmatpush2.msra.mxu0 %v113
    %316 = vmatprep.mubr.f32.mxu0 %v44
    %317 = vmatmul.mubr.f32.gmra.mxu0 %v43
    %v318 = vpop.f32.mrf.mxu0
    %v319 = vadd.f32 0.0, %v318
    %v320 = vpop.f32.mrf.mxu0
    %v321 = vadd.f32 0.0, %v320
    %322 = vmatprep.mubr.f32.mxu0 %v46
    %323 = vmatmul.mubr.f32.gmra.mxu0 %v45
    %v324 = vpop.f32.mrf.mxu0
    %v325 = vadd.f32 0.0, %v324
    %v326 = vpop.f32.mrf.mxu0
    %v327 = vadd.f32 0.0, %v326
    %328 = vdwg.mxu0
    %329 = vst [vmem:[#allocation7] sm:$0xff] %v242
    %330 = vst [vmem:[#allocation7 + $0x8] sm:$0xff] %v244
    %331 = vst [vmem:[#allocation7 + $0x10] sm:$0xff] %v248
    %332 = vst [vmem:[#allocation7 + $0x18] sm:$0xff] %v250
    %333 = vst [vmem:[#allocation8] sm:$0xff] %v319
    %334 = vst [vmem:[#allocation8 + $0x8] sm:$0xff] %v321
    %335 = vst [vmem:[#allocation8 + $0x10] sm:$0xff] %v325
    %336 = vst [vmem:[#allocation8 + $0x18] sm:$0xff] %v327
    // Predicated region
    $region18: #{tpu_custom_call.1} parent=1 // pred_check
      _
    $region19: #{tpu_custom_call.1} parent=1 // pred_check_branch
      %338 = sbr.rel (0) target = $region21
    $region20: #{tpu_custom_call.1} parent=1 // pred_region
      %s340 = ssub.s32 512, 512
      %341 = vsyncadd [#allocation4], %s340
      %s342 = sshll.u32 [#allocation7], 4
      %s343 = int_to_ptr.vmem [resolvable:$true] %s342
      %348 = dma.vmem_to_hbm [thread:$0]  %s343, 512, %s2, [#allocation4], 256, 256, 16
    $region21: #{tpu_custom_call.1} parent=1 // pred_fallthru
      _
    // Predicated region
    $region22: #{tpu_custom_call.1} parent=1 // pred_check
      _
    $region23: #{tpu_custom_call.1} parent=1 // pred_check_branch
      %350 = sbr.rel (0) target = $region25
    $region24: #{tpu_custom_call.1} parent=1 // pred_region
      %s352 = ssub.s32 512, 512
      %353 = vsyncadd [#allocation9], %s352
      %s354 = sshll.u32 [#allocation8], 4
      %s355 = int_to_ptr.vmem [resolvable:$true] %s354
      %360 = dma.vmem_to_hbm [thread:$0]  %s355, 512, %s3, [#allocation9], 256, 256, 16
    $region25: #{tpu_custom_call.1} parent=1 // pred_fallthru
      _
    // Predicated region
    $region26: #{tpu_custom_call.1} parent=1 // pred_check
      _
    $region27: #{tpu_custom_call.1} parent=1 // pred_check_branch
      %362 = sbr.rel (0) target = $region29
    $region28: #{tpu_custom_call.1} parent=1 // pred_region
      %363 = dma.done [#allocation4], 512
    $region29: #{tpu_custom_call.1} parent=1 // pred_fallthru
      _
    // Predicated region
    $region30: #{tpu_custom_call.1} parent=1 // pred_check
      _
    $region31: #{tpu_custom_call.1} parent=1 // pred_check_branch
      %365 = sbr.rel (0) target = $region33
    $region32: #{tpu_custom_call.1} parent=1 // pred_region
      %366 = dma.done [#allocation9], 512
    $region33: #{tpu_custom_call.1} parent=1 // pred_fallthru
      _
    %367 = vsyncpa [#allocation3], 1
    %368 = vsyncpa [#allocation6], 1
    %369 = vsyncpa [#allocation4], 1
    %370 = vsyncpa [#allocation9], 1

</llo_original>
